<compile_context>
chip_gen: v7x
topology: tpu7x:2x2x1
jax: 0.10.0
libtpu: 0.0.40
codegen_flags: <defaults>
</compile_context>

<pallas_src>
import functools
import math

import jax
import jax.numpy as jnp
from jax import lax
from jax.experimental import pallas as pl
from jax.experimental.pallas import tpu as pltpu


# ----------------------------------------------------------------------------
# Helpers
# ----------------------------------------------------------------------------
def _row_tile(m, cap=256):
    # Keep >= 2 grid steps where possible (v7x has 2 TensorCores), rows % 8 == 0,
    # and cap the tile so activation tiles stay in the few-MiB range at
    # realistic widths.  (On v6e a 512 cap measures closer to HBM roofline.)
    if m <= 8:
        return m
    if m <= 2 * cap:
        return max(8, (((m + 1) // 2) + 7) // 8 * 8)
    return cap


def _layernorm_f32(x_ref, g_ref, b_ref, eps):
    # PyTorch-spec LayerNorm: unbiased std (ddof=1), eps added to std.
    xf = x_ref[...].astype(jnp.float32)
    d = xf.shape[-1]
    mean = jnp.mean(xf, axis=-1, keepdims=True)
    xc = xf - mean
    std = jnp.sqrt(jnp.sum(xc * xc, axis=-1, keepdims=True) * (1.0 / (d - 1)))
    inv = pl.reciprocal(std + eps, approx=True)          # EUP, not VPU divide
    return (g_ref[...] * xc * inv + b_ref[...]).astype(x_ref.dtype)


# ----------------------------------------------------------------------------
# Kernels
# ----------------------------------------------------------------------------
def _scale_pe_kernel(x_ref, pe_ref, o_ref, *, scale):
    # Lane-dense 2D blocks: x (T, d) rows of one batch element, pe (T, d).
    o_ref[...] = (x_ref[...] * scale + pe_ref[...]).astype(o_ref.dtype)


def _linear_kernel(*refs, fuse_ln, activation, has_residual, eps):
    # refs: x, w, b, [ln_g, ln_b], [residual], out
    x_ref, w_ref, b_ref = refs[0], refs[1], refs[2]
    i = 3
    if fuse_ln:
        g_ref, beta_ref = refs[i], refs[i + 1]
        i += 2
    if has_residual:
        r_ref = refs[i]
        i += 1
    o_ref = refs[i]

    x = _layernorm_f32(x_ref, g_ref, beta_ref, eps) if fuse_ln else x_ref[...]
    y = jnp.dot(x, w_ref[...], preferred_element_type=jnp.float32)
    y = y + b_ref[...]
    if activation == "relu":
        y = jnp.maximum(y, 0.0)
    if has_residual:
        y = y + r_ref[...]
    o_ref[...] = y.astype(o_ref.dtype)


def _qkv_kernel(x_ref, w_ref, b_ref, g_ref, beta_ref, q_ref, k_ref, v_ref, *, eps):
    # Fused LN1 + single (d, 3d) QKV matmul; three (tm, d) outputs so q/k/v land
    # directly in the (B*T, d) layout the attention kernel consumes.
    d = x_ref.shape[-1]
    xn = _layernorm_f32(x_ref, g_ref, beta_ref, eps)
    y = jnp.dot(xn, w_ref[...], preferred_element_type=jnp.float32) + b_ref[...]
    q_ref[...] = y[:, :d].astype(q_ref.dtype)
    k_ref[...] = y[:, d:2 * d].astype(k_ref.dtype)
    v_ref[...] = y[:, 2 * d:].astype(v_ref.dtype)


def _mha_kernel(q_ref, k_ref, v_ref, o_ref, *, heads, sm_scale):
    # One batch element per grid step.  Heads are lane column slices of the
    # (T, d) block — no head-split transposes anywhere.  All head outputs are
    # concatenated and written with a single lane-dense (T, d) store.
    # TODO(synk): for large T, switch to flash-style KV tiling with causal
    # block skipping (not needed at T=8; full scores fit trivially in VMEM).
    T, d = q_ref.shape
    dk = d // heads
    row = lax.broadcasted_iota(jnp.int32, (T, T), 0)
    col = lax.broadcasted_iota(jnp.int32, (T, T), 1)
    causal = col <= row                               # subsequent_mask semantics
    contract_last = (((1,), (1,)), ((), ()))          # q @ k^T without a transpose

    outs = []
    for h in range(heads):
        lo = h * dk
        q = q_ref[:, lo:lo + dk]                      # native dtype into the MXU
        k = k_ref[:, lo:lo + dk]
        v = v_ref[:, lo:lo + dk]
        s = lax.dot_general(q, k, contract_last,
                            preferred_element_type=jnp.float32) * sm_scale
        s = jnp.where(causal, s, -1e9)                # masked_fill(mask == 0, -1e9)
        s = s - jnp.max(s, axis=-1, keepdims=True)
        p = jnp.exp(s)
        p = p * pl.reciprocal(jnp.sum(p, axis=-1, keepdims=True), approx=True)
        outs.append(jnp.dot(p.astype(v.dtype), v,
                            preferred_element_type=jnp.float32))
    o_ref[...] = jnp.concatenate(outs, axis=-1).astype(o_ref.dtype)


# ----------------------------------------------------------------------------
# pallas_call wrappers
# ----------------------------------------------------------------------------
def add_positional_encoding(x2d, pe, scale, *, batch, seq):
    M, d = x2d.shape
    spec = pl.BlockSpec((seq, d), lambda b: (b, 0))
    return pl.pallas_call(
        functools.partial(_scale_pe_kernel, scale=scale),
        out_shape=jax.ShapeDtypeStruct((M, d), x2d.dtype),
        grid_spec=pltpu.PrefetchScalarGridSpec(
            num_scalar_prefetch=0, grid=(batch,),
            in_specs=[spec, pl.BlockSpec((seq, d), lambda b: (0, 0))],
            out_specs=spec),
        compiler_params=pltpu.CompilerParams(dimension_semantics=("parallel",)),
    )(x2d, pe)


def linear(x, w, b, *, ln=None, activation=None, residual=None, eps=1e-6):
    """y = [LN](x) @ w + b  (+ optional fused ReLU, + optional fused residual)."""
    M, K = x.shape
    _, N = w.shape
    tm = _row_tile(M)
    tn = N if N <= 512 else 512           # 512 = 2x256 MXU tiles on v6e/v7x
    grid = (pl.cdiv(M, tm), pl.cdiv(N, tn))

    in_specs = [pl.BlockSpec((tm, K), lambda i, j: (i, 0)),
                pl.BlockSpec((K, tn), lambda i, j: (0, j)),
                pl.BlockSpec((1, tn), lambda i, j: (0, j))]
    args = [x, w, b]
    if ln is not None:
        g, beta = ln
        in_specs += [pl.BlockSpec((1, K), lambda i, j: (0, 0)),
                     pl.BlockSpec((1, K), lambda i, j: (0, 0))]
        args += [g, beta]
    if residual is not None:
        in_specs.append(pl.BlockSpec((tm, tn), lambda i, j: (i, j)))
        args.append(residual)

    kernel = functools.partial(_linear_kernel, fuse_ln=ln is not None,
                               activation=activation,
                               has_residual=residual is not None, eps=eps)
    return pl.pallas_call(
        kernel,
        out_shape=jax.ShapeDtypeStruct((M, N), x.dtype),
        grid_spec=pltpu.PrefetchScalarGridSpec(
            num_scalar_prefetch=0, grid=grid,
            in_specs=in_specs,
            out_specs=pl.BlockSpec((tm, tn), lambda i, j: (i, j))),
        compiler_params=pltpu.CompilerParams(
            dimension_semantics=("parallel", "parallel")),
    )(*args)


def qkv_projection(x, wqkv, bqkv, gamma, beta, eps=1e-6):
    """Fused LN1 + QKV projection: one matmul, three (M, d) outputs."""
    M, d = x.shape
    tm = _row_tile(M)
    grid = (pl.cdiv(M, tm),)
    out = jax.ShapeDtypeStruct((M, d), x.dtype)
    row_spec = pl.BlockSpec((tm, d), lambda i: (i, 0))
    return pl.pallas_call(
        functools.partial(_qkv_kernel, eps=eps),
        out_shape=(out, out, out),
        grid_spec=pltpu.PrefetchScalarGridSpec(
            num_scalar_prefetch=0, grid=grid,
            in_specs=[row_spec,
                      pl.BlockSpec((d, 3 * d), lambda i: (0, 0)),
                      pl.BlockSpec((1, 3 * d), lambda i: (0, 0)),
                      pl.BlockSpec((1, d), lambda i: (0, 0)),
                      pl.BlockSpec((1, d), lambda i: (0, 0))],
            out_specs=(row_spec, row_spec, row_spec)),
        compiler_params=pltpu.CompilerParams(dimension_semantics=("parallel",)),
    )(x, wqkv, bqkv, gamma, beta)


def causal_attention(q, k, v, *, batch, seq, heads, sm_scale):
    """Causal multi-head attention over the flat (B*T, d) layout (no transposes)."""
    M, d = q.shape
    spec = pl.BlockSpec((seq, d), lambda b: (b, 0))
    return pl.pallas_call(
        functools.partial(_mha_kernel, heads=heads, sm_scale=sm_scale),
        out_shape=jax.ShapeDtypeStruct((M, d), q.dtype),
        grid_spec=pltpu.PrefetchScalarGridSpec(
            num_scalar_prefetch=0, grid=(batch,),
            in_specs=[spec, spec, spec], out_specs=spec),
        compiler_params=pltpu.CompilerParams(dimension_semantics=("parallel",)),
    )(q, k, v)


# ----------------------------------------------------------------------------
# Model: parameters + forward pass
# ----------------------------------------------------------------------------
def make_positional_encoding(T, d, dtype=jnp.float32):
    # Mirrors the spec's PositionalEncoding buffer exactly (including its
    # non-canonical cos div_term built from arange(1, d, 2)).
    position = jnp.arange(T, dtype=jnp.float32)[:, None]
    div_sin = 1.0 / (10000.0 ** (2.0 * jnp.arange(0, d, 2, dtype=jnp.float32) / d))
    div_cos = 1.0 / (10000.0 ** (2.0 * jnp.arange(1, d, 2, dtype=jnp.float32) / d))
    pe = jnp.zeros((T, d), dtype=jnp.float32)
    pe = pe.at[:, 0::2].set(jnp.sin(position * div_sin[None, :]))
    pe = pe.at[:, 1::2].set(jnp.cos(position * div_cos[None, :]))
    return pe.astype(dtype)


def init_params(key, args, dtype=jnp.float32):
    d, dff = args["d"], args["hidden_size"]
    nc, depth, T = args["num_classes"], args["depth"], args["T"]

    def dense(k, fan_in, fan_out):
        kw, kb = jax.random.split(k)
        bound = 1.0 / math.sqrt(fan_in)
        w = jax.random.uniform(kw, (fan_in, fan_out), dtype, -bound, bound)
        b = jax.random.uniform(kb, (1, fan_out), dtype, -bound, bound)
        return w, b

    keys = iter(jax.random.split(key, depth * 6 + 1))
    layers = []
    for _ in range(depth):
        wq, bq = dense(next(keys), d, d)
        wk, bk = dense(next(keys), d, d)
        wv, bv = dense(next(keys), d, d)
        wo, bo = dense(next(keys), d, d)
        w1, b1 = dense(next(keys), d, dff)
        w2, b2 = dense(next(keys), dff, d)
        layers.append(dict(
            wqkv=jnp.concatenate([wq, wk, wv], axis=1),   # (d, 3d) fused weight
            bqkv=jnp.concatenate([bq, bk, bv], axis=1),   # (1, 3d) fused bias
            wo=wo, bo=bo, w1=w1, b1=b1, w2=w2, b2=b2,
            ln1_g=jnp.ones((1, d), dtype), ln1_b=jnp.zeros((1, d), dtype),
            ln2_g=jnp.ones((1, d), dtype), ln2_b=jnp.zeros((1, d), dtype)))
    wlast, blast = dense(next(keys), d, nc)
    return dict(layers=layers,
                norm_g=jnp.ones((1, d), dtype), norm_b=jnp.zeros((1, d), dtype),
                wlast=wlast, blast=blast,
                pe=make_positional_encoding(T, d, dtype))


def transformer_forward(params, x, args):
    """Eval-mode forward pass (dropout layers are identity)."""
    # TODO(synk): stochastic training-mode nn.Dropout is not implemented
    # (eval-mode / inference semantics only).
    B, T, d = x.shape
    h = args["heads"]
    dk = d // h
    sm_scale = 1.0 / math.sqrt(dk)

    # scale + positional encoding on the flat lane-dense (B*T, d) view
    x2d = add_positional_encoding(x.reshape(B * T, d), params["pe"],
                                  math.sqrt(d), batch=B, seq=T)

    for layer in params["layers"]:
        # --- self-attention sublayer (pre-norm, residual) ---
        q, k, v = qkv_projection(x2d, layer["wqkv"], layer["bqkv"],
                                 layer["ln1_g"], layer["ln1_b"])     # LN1 fused
        a = causal_attention(q, k, v, batch=B, seq=T, heads=h, sm_scale=sm_scale)
        x2d = linear(a, layer["wo"], layer["bo"], residual=x2d)      # fused residual

        # --- feed-forward sublayer (pre-norm, residual) ---
        hid = linear(x2d, layer["w1"], layer["b1"],
                     ln=(layer["ln2_g"], layer["ln2_b"]),
                     activation="relu")                               # LN2 + ReLU fused
        x2d = linear(hid, layer["w2"], layer["b2"], residual=x2d)     # fused residual

    # final LayerNorm fused into the classification head matmul
    out = linear(x2d, params["wlast"], params["blast"],
                 ln=(params["norm_g"], params["norm_b"]))
    return out.reshape(B, T, args["num_classes"])


# ----------------------------------------------------------------------------
# Pure-JAX reference (mirrors the PyTorch math) for correctness checking
# ----------------------------------------------------------------------------
def reference_forward(params, x, args):
    B, T, d = x.shape
    h = args["heads"]
    dk = d // h

    def ln(t, g, b, eps=1e-6):
        mean = t.mean(-1, keepdims=True)
        std = jnp.sqrt(((t - mean) ** 2).sum(-1, keepdims=True) / (t.shape[-1] - 1))
        return g[0] * (t - mean) / (std + eps) + b[0]

    x = x * math.sqrt(d) + params["pe"][None, :, :]
    for layer in params["layers"]:
        xn = ln(x, layer["ln1_g"], layer["ln1_b"])
        qkv = xn @ layer["wqkv"] + layer["bqkv"][0]
        q, k, v = qkv[..., :d], qkv[..., d:2 * d], qkv[..., 2 * d:]

        def split(t):
            return t.reshape(B, T, h, dk).transpose(0, 2, 1, 3)

        qh, kh, vh = split(q), split(k), split(v)
        s = jnp.einsum("bhqd,bhkd->bhqk", qh, kh) / math.sqrt(dk)
        causal = jnp.tril(jnp.ones((T, T), bool))
        s = jnp.where(causal[None, None], s, -1e9)
        p = jax.nn.softmax(s, axis=-1)
        a = jnp.einsum("bhqk,bhkd->bhqd", p, vh)
        a = a.transpose(0, 2, 1, 3).reshape(B, T, d)
        x = x + (a @ layer["wo"] + layer["bo"][0])

        xn = ln(x, layer["ln2_g"], layer["ln2_b"])
        hid = jnp.maximum(xn @ layer["w1"] + layer["b1"][0], 0.0)
        x = x + (hid @ layer["w2"] + layer["b2"][0])

    x = ln(x, params["norm_g"], params["norm_b"])
    return x @ params["wlast"] + params["blast"][0]


# ----------------------------------------------------------------------------
if __name__ == "__main__":
    args = dict(d=32, heads=4, hidden_size=64, depth=2, num_classes=8,
                T=8, dropout=0.1)
    B = 2

    key = jax.random.PRNGKey(0)
    kx, kp = jax.random.split(key)
    x = jax.random.normal(kx, (B, args["T"], args["d"]), jnp.float32)
    params = init_params(kp, args)

    out = transformer_forward(params, x, args)
    out = jax.block_until_ready(out)

    ref = reference_forward(params, x, args)
    assert out.shape == (B, args["T"], args["num_classes"])
    max_err = float(jnp.max(jnp.abs(out - ref)))
    assert jnp.allclose(out, ref, atol=1e-2, rtol=1e-2), f"max_err={max_err}"

    print("KERNEL_OK")
</pallas_src>

<mosaic_0001>
module attributes {stable_mosaic.version = 11 : i64} {
  func.func @_scale_pe_kernel(%arg0: i32, %arg1: memref<8x32xf32, #tpu.memory_space<vmem>>, %arg2: memref<8x32xf32, #tpu.memory_space<vmem>>, %arg3: memref<8x32xf32, #tpu.memory_space<vmem>>) attributes {dimension_semantics = [#tpu.dimension_semantics<parallel>], iteration_bounds = array<i64: 2>, scalar_prefetch = 0 : i64, scratch_operands = 0 : i64, tpu.core_type = #tpu.core_type<tc>, window_params = [{transform_indices = @transform_0, window_bounds = array<i64: 8, 32>}, {pipeline_mode = #tpu.pipeline_mode<synchronous>, transform_indices = @transform_1, window_bounds = array<i64: 8, 32>}, {transform_indices = @transform_2, window_bounds = array<i64: 8, 32>}]} {
    %c0 = arith.constant 0 : index
    %c0_0 = arith.constant 0 : index
    %0 = vector.load %arg1[%c0, %c0_0] : memref<8x32xf32, #tpu.memory_space<vmem>>, vector<8x32xf32>
    %cst = arith.constant 5.65685415 : f32
    %1 = vector.broadcast %cst : f32 to vector<8x32xf32>
    %2 = arith.mulf %0, %1 : vector<8x32xf32>
    %c0_1 = arith.constant 0 : index
    %c0_2 = arith.constant 0 : index
    %3 = vector.load %arg2[%c0_1, %c0_2] : memref<8x32xf32, #tpu.memory_space<vmem>>, vector<8x32xf32>
    %4 = arith.addf %2, %3 : vector<8x32xf32>
    %c0_3 = arith.constant 0 : index
    %c0_4 = arith.constant 0 : index
    %5 = vector.load %arg3[%c0_3, %c0_4] : memref<8x32xf32, #tpu.memory_space<vmem>>, vector<8x32xf32>
    tpu.vector_store %arg3[%c0_3, %c0_4], %4 {strides = array<i32>} : memref<8x32xf32, #tpu.memory_space<vmem>>, vector<8x32xf32>,
    return
  }
  func.func @transform_0(%arg0: i32) -> (i32, i32) {
    %c0_i32 = arith.constant 0 : i32
    %c0_i32_0 = arith.constant 0 : i32
    return %arg0, %c0_i32 : i32, i32
  }
  func.func @transform_1(%arg0: i32) -> (i32, i32) {
    %c0_i32 = arith.constant 0 : i32
    %c0_i32_0 = arith.constant 0 : i32
    %c0_i32_1 = arith.constant 0 : i32
    return %c0_i32, %c0_i32_0 : i32, i32
  }
  func.func @transform_2(%arg0: i32) -> (i32, i32) {
    %c0_i32 = arith.constant 0 : i32
    %c0_i32_0 = arith.constant 0 : i32
    return %arg0, %c0_i32 : i32, i32
  }
}

</mosaic_0001>

<llo_original>
// kernel: tpu_custom_call.1
$region0: #{tpu_custom_call.1}
  #allocation0 [shape = 'u32[]', space=smem, size = 0x4, offset = 0x4, fixed_abs, tag = 'smem constant byte address 0x4 - core index']
  #allocation1 [shape = 'u32[144,128]{1,0:T(1,128)}', space=vmem, size = 0x12000, scoped, tag = 'internal scratch']
  %s0 = inlined_call_operand.hbm [shape: f32[16,32], index: 0, kind: input, shape index: {}]
  %s1 = inlined_call_operand.hbm [shape: f32[8,32], index: 1, kind: input, shape index: {}]
  %s2 = inlined_call_operand.hbm [shape: f32[16,32], index: 2, kind: output, shape index: {}]
  %s3 = sld [smem:[#allocation0]]
  $region49: #{tpu_custom_call.1} parent=0
    _
  %s5 = ssub.s32 1, %s3
  %s6 = scalar_select 0, %s5, %s3
  $region1: #{tpu_custom_call.1} parent=0
    #allocation2 [shape = 'u8[8192]{0}', space=vmem, size = 0x2000, scoped, tag = 'input window, operand 0']
    #allocation3 [shape = 's32[2]{0}', space=sflag, size = 0x8, scoped, tag = 'scoped memory for tpu_custom_call.1']
    #allocation4 [shape = 's32[2]{0}', space=sflag, size = 0x8, scoped, tag = 'scoped memory for tpu_custom_call.1']
    #allocation5 [shape = 'u8[4096]{0}', space=vmem, size = 0x1000, scoped, tag = 'input window, operand 1, single buffered']
    #allocation6 [shape = 's32[1]{0}', space=sflag, size = 0x4, scoped, tag = 'scoped memory for tpu_custom_call.1']
    #allocation7 [shape = 'u8[8192]{0}', space=vmem, size = 0x2000, scoped, tag = 'output window, operand 0']
    %7 = vsyncpa [#allocation3], 0
    %s8 = scalar_lea.sflag [#allocation3], 1
    %9 = vsyncpa %s8, 0
    %10 = vsyncpa [#allocation6], 0
    %11 = vsyncpa [#allocation4], 0
    %s12 = scalar_lea.sflag [#allocation4], 1
    %13 = vsyncpa %s12, 0
    loop: start=0, step=1, limit=4
    $region2: #{tpu_custom_call.1} parent=1 // loop_pre_header
      _
    $region3: #{tpu_custom_call.1} parent=1 // loop_header
      %s15 = sphi 0, %s19
      %p16 = scmp.ge.s32.totalorder %s15, 4
      %s25 = sphi 0, %s27
      %s28 = sphi 0, %s25
      %s29 = sphi 0, %s28
      %s45 = sphi 0, %s29
      %s49 = sphi 0, %s49
      %s51 = sphi 0, %s49
      %s52 = sphi 0, %s51
      %s66 = sphi 0, %s52
      %s72 = sphi 0, %s74
      %s75 = sphi 0, %s72
      %s76 = sphi 0, %s75
      %s92 = sphi 0, %s76
    $region4: #{tpu_custom_call.1} parent=1 // loop_header_branch
      %18 = sbr.rel (%p16) target = $region8
    $region5: #{tpu_custom_call.1} parent=1 // loop_body
      %s20 = ssub.s32 %s15, 1
      %s21 = ssub.s32 %s15, 2
      %s22 = sadd.s32 %s15, 1
      %s23 = ssub.s32 %s15, %s22
      %p24 = scmp.eq.s32.totalorder %s23, 0
      %s26 = sadd.s32 %s25, 1
      %s27 = scalar_select %p24, %s25, %s26
      %p30 = pneg %p24
      %p31 = scmp.eq.s32.totalorder %s15, 1
      %p32 = por %p30, %p31
      %p33 = scmp.ne.s32.totalorder %s25, %s28
      %p34 = scmp.eq.s32.totalorder %s15, 0
      %p35 = por %p33, %p34
      %p36 = scmp.ne.s32.totalorder %s25, %s28
      %p37 = scmp.eq.s32.totalorder %s20, 1
      %p38 = por %p36, %p37
      %p39 = scmp.ne.s32.totalorder %s28, %s29
      %p40 = scmp.eq.s32.totalorder %s20, 0
      %p41 = por %p39, %p40
      %p42 = scmp.ne.s32.totalorder %s28, %s29
      %p43 = scmp.eq.s32.totalorder %s21, 1
      %p44 = por %p42, %p43
      %p46 = scmp.ne.s32.totalorder %s29, %s45
      %p47 = scmp.eq.s32.totalorder %s21, 0
      %p48 = por %p46, %p47
      %s50 = sadd.s32 %s49, 1
      %p53 = scmp.eq.s32.totalorder %s15, 1
      %p54 = scmp.ne.s32.totalorder %s49, %s51
      %p55 = scmp.eq.s32.totalorder %s15, 0
      %p56 = por %p54, %p55
      %p57 = scmp.ne.s32.totalorder %s49, %s51
      %p58 = scmp.eq.s32.totalorder %s20, 1
      %p59 = por %p57, %p58
      %p60 = scmp.ne.s32.totalorder %s51, %s52
      %p61 = scmp.eq.s32.totalorder %s20, 0
      %p62 = por %p60, %p61
      %p63 = scmp.ne.s32.totalorder %s51, %s52
      %p64 = scmp.eq.s32.totalorder %s21, 1
      %p65 = por %p63, %p64
      %p67 = scmp.ne.s32.totalorder %s52, %s66
      %p68 = scmp.eq.s32.totalorder %s21, 0
      %p69 = por %p67, %p68
      %s70 = ssub.s32 %s15, %s22
      %p71 = scmp.eq.s32.totalorder %s70, 0
      %s73 = sadd.s32 %s72, 1
      %s74 = scalar_select %p71, %s72, %s73
      %p77 = pneg %p71
      %p78 = scmp.eq.s32.totalorder %s15, 1
      %p79 = por %p77, %p78
      %p80 = scmp.ne.s32.totalorder %s72, %s75
      %p81 = scmp.eq.s32.totalorder %s15, 0
      %p82 = por %p80, %p81
      %p83 = scmp.ne.s32.totalorder %s72, %s75
      %p84 = scmp.eq.s32.totalorder %s20, 1
      %p85 = por %p83, %p84
      %p86 = scmp.ne.s32.totalorder %s75, %s76
      %p87 = scmp.eq.s32.totalorder %s20, 0
      %p88 = por %p86, %p87
      %p89 = scmp.ne.s32.totalorder %s75, %s76
      %p90 = scmp.eq.s32.totalorder %s21, 1
      %p91 = por %p89, %p90
      %p93 = scmp.ne.s32.totalorder %s76, %s92
      %p94 = scmp.eq.s32.totalorder %s21, 0
      %p95 = por %p93, %p94
      %p96 = scmp.le.s32.totalorder 1, %s15
      %p97 = scmp.lt.s32.totalorder %s15, 3
      %p98 = pnand %p96, %p97
      %p99 = pneg %p98
      // Predicated region
      $region9: #{tpu_custom_call.1} parent=5 // pred_check
        _
      $region10: #{tpu_custom_call.1} parent=5 // pred_check_branch
        %101 = sbr.rel (%p98) target = $region12
      $region11: #{tpu_custom_call.1} parent=5 // pred_region
        %s102 = ssub.s32 %s15, 1
        // Predicated region
        $region13: #{tpu_custom_call.1} parent=11 // pred_check
          %p103 = pneg %p62
        $region14: #{tpu_custom_call.1} parent=11 // pred_check_branch
          %105 = sbr.rel (%p103) target = $region16
        $region15: #{tpu_custom_call.1} parent=11 // pred_region
          %s107 = ssub.s32 128, 128
          %108 = vsyncadd [#allocation6], %s107
          %s110 = sshll.u32 [#allocation5], 4
          %s111 = int_to_ptr.vmem [resolvable:$true] %s110
          %113 = dma.hbm_to_vmem [thread:$0]  %s1, 128, %s111, [#allocation6]
        $region16: #{tpu_custom_call.1} parent=11 // pred_fallthru
          _
      $region12: #{tpu_custom_call.1} parent=5 // pred_fallthru
        _
      %p114 = scmp.lt.s32.totalorder %s15, 2
      // Predicated region
      $region17: #{tpu_custom_call.1} parent=5 // pred_check
        %p115 = pneg %p114
      $region18: #{tpu_custom_call.1} parent=5 // pred_check_branch
        %117 = sbr.rel (%p115) target = $region20
      $region19: #{tpu_custom_call.1} parent=5 // pred_region
        // Predicated region
        $region21: #{tpu_custom_call.1} parent=19 // pred_check
          %p118 = pneg %p35
        $region22: #{tpu_custom_call.1} parent=19 // pred_check_branch
          %120 = sbr.rel (%p118) target = $region24
        $region23: #{tpu_custom_call.1} parent=19 // pred_region
          %s121 = sand.u32 %s25, 1
          %s122 = scalar_lea.sflag [#allocation3], %s121
          %s123 = sand.u32 %s25, 1
          %s124 = smul.addr %s123, 8
          %s125 = scalar_lea.vmem [#allocation2], %s124
          %s127 = ssub.s32 128, 128
          %128 = vsyncadd %s122, %s127
          %s129 = smul.addr %s15, 128
          %s130 = scalar_lea.hbm %s0, %s129
          %s132 = sshll.u32 %s125, 4
          %s133 = int_to_ptr.vmem [resolvable:$true] %s132
          %135 = dma.hbm_to_vmem [thread:$0]  %s130, 128, %s133, %s122
        $region24: #{tpu_custom_call.1} parent=19 // pred_fallthru
          _
      $region20: #{tpu_custom_call.1} parent=5 // pred_fallthru
        _
      %p136 = scmp.le.s32.totalorder 1, %s15
      %p137 = scmp.lt.s32.totalorder %s15, 3
      %p138 = pnand %p136, %p137
      %p139 = pneg %p138
      // Predicated region
      $region25: #{tpu_custom_call.1} parent=5 // pred_check
        _
      $region26: #{tpu_custom_call.1} parent=5 // pred_check_branch
        %141 = sbr.rel (%p138) target = $region28
      $region27: #{tpu_custom_call.1} parent=5 // pred_region
        %s142 = ssub.s32 %s15, 1
        %s143 = sand.u32 %s28, 1
        %s144 = scalar_lea.sflag [#allocation3], %s143
        %s145 = sand.u32 %s28, 1
        %s146 = smul.addr %s145, 8
        %s147 = scalar_lea.vmem [#allocation2], %s146
        // Predicated region
        $region29: #{tpu_custom_call.1} parent=27 // pred_check
          %p148 = pneg %p41
        $region30: #{tpu_custom_call.1} parent=27 // pred_check_branch
          %150 = sbr.rel (%p148) target = $region32
        $region31: #{tpu_custom_call.1} parent=27 // pred_region
          %151 = dma.done %s144, 128
        $region32: #{tpu_custom_call.1} parent=27 // pred_fallthru
          _
        // Predicated region
        $region33: #{tpu_custom_call.1} parent=27 // pred_check
          %p152 = pneg %p62
        $region34: #{tpu_custom_call.1} parent=27 // pred_check_branch
          %154 = sbr.rel (%p152) target = $region36
        $region35: #{tpu_custom_call.1} parent=27 // pred_region
          %155 = dma.done [#allocation6], 128
        $region36: #{tpu_custom_call.1} parent=27 // pred_fallthru
          _
        %s156 = sand.u32 %s28, 1
        %s157 = scalar_lea.sflag [#allocation3], %s156
        %s158 = sand.u32 %s28, 1
        %s159 = smul.addr %s158, 8
        %s160 = scalar_lea.vmem [#allocation2], %s159
        %p161 = pneg %p41
        %p162 = pneg %p38
        %p163 = pneg %p62
        %p164 = pneg %p59
        %p165 = pneg %p88
        %p166 = pneg %p85
        %s167 = sand.u32 %s75, 1
        %s168 = scalar_lea.sflag [#allocation4], %s167
        %s169 = sand.u32 %s75, 1
        %s170 = smul.addr %s169, 8
        %s171 = scalar_lea.vmem [#allocation7], %s170
        %v172 = vld [vmem:[%s147] sm:$0xff]
        %v173 = vmul.f32 %v172, 5.656854
        %v174 = vld [vmem:[#allocation5] sm:$0xff]
        %v175 = vadd.f32 %v173, %v174
        %vm176 = vcmask 261120
        %177 = vst.msk [vmem:[%s171] sm:$0xff] %vm176, %v175
        %s178 = sand.u32 %s75, 1
        %s179 = scalar_lea.sflag [#allocation4], %s178
        %s180 = sand.u32 %s75, 1
        %s181 = smul.addr %s180, 8
        %s182 = scalar_lea.vmem [#allocation7], %s181
        // Predicated region
        $region37: #{tpu_custom_call.1} parent=27 // pred_check
          %p183 = pneg %p85
        $region38: #{tpu_custom_call.1} parent=27 // pred_check_branch
          %185 = sbr.rel (%p183) target = $region40
        $region39: #{tpu_custom_call.1} parent=27 // pred_region
          %s187 = ssub.s32 128, 128
          %188 = vsyncadd %s179, %s187
          %s189 = smul.addr %s20, 128
          %s190 = scalar_lea.hbm %s2, %s189
          %s192 = sshll.u32 %s182, 4
          %s193 = int_to_ptr.vmem [resolvable:$true] %s192
          %195 = dma.vmem_to_hbm [thread:$0]  %s193, 128, %s190, %s179
        $region40: #{tpu_custom_call.1} parent=27 // pred_fallthru
          _
      $region28: #{tpu_custom_call.1} parent=5 // pred_fallthru
        _
      %p196 = scmp.le.s32.totalorder 2, %s15
      // Predicated region
      $region41: #{tpu_custom_call.1} parent=5 // pred_check
        %p197 = pneg %p196
      $region42: #{tpu_custom_call.1} parent=5 // pred_check_branch
        %199 = sbr.rel (%p197) target = $region44
      $region43: #{tpu_custom_call.1} parent=5 // pred_region
        %s200 = ssub.s32 %s15, 2
        // Predicated region
        $region45: #{tpu_custom_call.1} parent=43 // pred_check
          %p201 = pneg %p91
        $region46: #{tpu_custom_call.1} parent=43 // pred_check_branch
          %203 = sbr.rel (%p201) target = $region48
        $region47: #{tpu_custom_call.1} parent=43 // pred_region
          %s204 = sand.u32 %s76, 1
          %s205 = scalar_lea.sflag [#allocation4], %s204
          %s206 = sand.u32 %s76, 1
          %s207 = smul.addr %s206, 8
          %s208 = scalar_lea.vmem [#allocation7], %s207
          %209 = dma.done %s205, 128
        $region48: #{tpu_custom_call.1} parent=43 // pred_fallthru
          _
      $region44: #{tpu_custom_call.1} parent=5 // pred_fallthru
        _
    $region6: #{tpu_custom_call.1} parent=1 // loop_footer
      %s19 = sadd.s32 1, %s15
    $region7: #{tpu_custom_call.1} parent=1 // loop_footer_branch
      %14 = sbr.rel target = $region3
    $region8: #{tpu_custom_call.1} parent=1 // loop_exit
      _
    %210 = vsyncpa [#allocation3], 1
    %s211 = scalar_lea.sflag [#allocation3], 1
    %212 = vsyncpa %s211, 1
    %213 = vsyncpa [#allocation6], 1
    %214 = vsyncpa [#allocation4], 1
    %s215 = scalar_lea.sflag [#allocation4], 1
    %216 = vsyncpa %s215, 1

</llo_original>
